<compile_context>
chip_gen: v5e
topology: v5e:2x2
jax: 0.10.0
libtpu: 0.0.40
codegen_flags: <defaults>
</compile_context>

<pallas_src>
import functools

import jax
import jax.numpy as jnp
from jax import lax
from jax.experimental import pallas as pl
from jax.experimental.pallas import tpu as pltpu


def _round_up(x: int, m: int) -> int:
    return ((x + m - 1) // m) * m


def _linear_lora_kernel(x_ref, w_ref, b_ref, a_ref, blo_ref, o_ref,
                        acc_ref, state_ref, *, alpha):
    k = pl.program_id(2)
    nk = pl.num_programs(2)

    @pl.when(k == 0)
    def _():
        acc_ref[...] = jnp.zeros_like(acc_ref)
        state_ref[...] = jnp.zeros_like(state_ref)

    x = x_ref[...]          # (tm, tk)
    w = w_ref[...]          # (tn, tk)
    a = a_ref[...]          # (R,  tk)

    # Base linear partial sum: x @ W^T, contracting K of both operands
    # directly (no in-kernel transpose of the weight tile).
    acc_ref[...] += lax.dot_general(
        x, w, dimension_numbers=(((1,), (1,)), ((), ())),
        preferred_element_type=jnp.float32)

    # LoRA down-projection partial sum: x @ A^T  -> (tm, R)
    state_ref[...] += lax.dot_general(
        x, a, dimension_numbers=(((1,), (1,)), ((), ())),
        preferred_element_type=jnp.float32)

    @pl.when(k == nk - 1)
    def _():
        b_lora = blo_ref[...]   # (tn, R)
        # Up-projection: state @ B_lora^T, contracting R of both operands.
        lora = lax.dot_general(
            state_ref[...], b_lora,
            dimension_numbers=(((1,), (1,)), ((), ())),
            preferred_element_type=jnp.float32)          # (tm, tn)
        out = acc_ref[...] + b_ref[...] + alpha * lora
        o_ref[...] = out.astype(o_ref.dtype)


def linear_with_lora(x, w, b, a, b_lora, *, alpha=1.5):
    """Fused forward of Linear_with_LoRA.

    x:      (..., K)  activations
    w:      (N, K)    linear weight (torch layout: out x in)
    b:      (N,)      linear bias
    a:      (R, K)    LoRA down-projection weight
    b_lora: (N, R)    LoRA up-projection weight
    """
    orig_shape = x.shape
    K = orig_shape[-1]
    x2d = x.reshape(-1, K)
    M = x2d.shape[0]
    N = w.shape[0]
    R = a.shape[0]
    out_dtype = x.dtype

    # ---- tile sizes (lane-dense, MXU-friendly, modest VMEM footprint) ----
    tm = min(_round_up(M, 8), 256)
    tn = min(_round_up(N, 128), 256)
    tk = min(_round_up(K, 128), 512)

    Mp = _round_up(M, tm)
    Np = _round_up(N, tn)
    Kp = _round_up(K, tk)

    # ---- zero-pad so every block is full-size and (8,128)-aligned -------
    xp = jnp.pad(x2d, ((0, Mp - M), (0, Kp - K)))
    wp = jnp.pad(w, ((0, Np - N), (0, Kp - K)))
    bp = jnp.pad(b.reshape(1, N), ((0, 0), (0, Np - N)))
    ap = jnp.pad(a, ((0, 0), (0, Kp - K)))
    blp = jnp.pad(b_lora, ((0, Np - N), (0, 0)))

    grid = (Mp // tm, Np // tn, Kp // tk)

    kernel = functools.partial(_linear_lora_kernel, alpha=float(alpha))

    flops = 2 * M * N * K + 2 * M * K * R + 2 * M * R * N
    itemsize = jnp.dtype(out_dtype).itemsize
    bytes_accessed = (x2d.size + w.size + b.size + a.size + b_lora.size
                      + M * N) * itemsize
    cost = pl.CostEstimate(flops=flops, transcendentals=0,
                           bytes_accessed=bytes_accessed)

    out_padded = pl.pallas_call(
        kernel,
        out_shape=jax.ShapeDtypeStruct((Mp, Np), out_dtype),
        grid_spec=pltpu.PrefetchScalarGridSpec(
            num_scalar_prefetch=0,
            grid=grid,
            in_specs=[
                pl.BlockSpec((tm, tk), lambda i, j, k: (i, k)),   # x
                pl.BlockSpec((tn, tk), lambda i, j, k: (j, k)),   # W
                pl.BlockSpec((1, tn), lambda i, j, k: (0, j)),    # bias
                pl.BlockSpec((R, tk), lambda i, j, k: (0, k)),    # A
                pl.BlockSpec((tn, R), lambda i, j, k: (j, 0)),    # B_lora
            ],
            out_specs=pl.BlockSpec((tm, tn), lambda i, j, k: (i, j)),
            scratch_shapes=[
                pltpu.VMEM((tm, tn), jnp.float32),   # base accumulator
                pltpu.VMEM((tm, R), jnp.float32),    # LoRA state accumulator
            ],
        ),
        compiler_params=pltpu.CompilerParams(
            dimension_semantics=("parallel", "parallel", "arbitrary"),
            vmem_limit_bytes=48 * 1024 * 1024,
        ),
        cost_estimate=cost,
    )(xp, wp, bp, ap, blp)

    out = out_padded[:M, :N]
    return out.reshape(orig_shape[:-1] + (N,))


def _reference(x, w, b, a, b_lora, alpha):
    return x @ w.T + b + alpha * ((x @ a.T) @ b_lora.T)


if __name__ == "__main__":
    # Shapes consistent with the module: batch=8, in=32, out=64, rank=16.
    M, K, N, R = 8, 32, 64, 16
    alpha = 1.5

    key = jax.random.PRNGKey(0)
    kx, kw, kb, ka, kbl = jax.random.split(key, 5)

    x = jax.random.normal(kx, (M, K), dtype=jnp.float32)

    # nn.Linear default init: U(-1/sqrt(in), 1/sqrt(in)) for weight and bias.
    lim = 1.0 / (K ** 0.5)
    w = jax.random.uniform(kw, (N, K), minval=-lim, maxval=lim, dtype=jnp.float32)
    b = jax.random.uniform(kb, (N,), minval=-lim, maxval=lim, dtype=jnp.float32)

    # LoRA init: kaiming_uniform_(a=sqrt(5)); output_transformation starts at 0,
    # but use non-zero values here so the LoRA path is actually exercised.
    a_w = jax.random.uniform(ka, (R, K), minval=-lim, maxval=lim, dtype=jnp.float32)
    b_lora = jax.random.uniform(kbl, (N, R), minval=-0.1, maxval=0.1,
                                dtype=jnp.float32)

    out = linear_with_lora(x, w, b, a_w, b_lora, alpha=alpha)
    out = jax.block_until_ready(out)

    ref = _reference(x, w, b, a_w, b_lora, alpha)
    assert out.shape == (M, N)
    assert jnp.allclose(out, ref, atol=1e-4, rtol=1e-4)

    # Second, multi-tile check (exercises K accumulation, N tiling, padding).
    M2, K2, N2, R2 = 16, 640, 384, 16
    kx2, kw2, kb2, ka2, kbl2 = jax.random.split(jax.random.PRNGKey(1), 5)
    lim2 = 1.0 / (K2 ** 0.5)
    x2 = jax.random.normal(kx2, (M2, K2), dtype=jnp.float32)
    w2 = jax.random.uniform(kw2, (N2, K2), minval=-lim2, maxval=lim2,
                            dtype=jnp.float32)
    b2 = jax.random.uniform(kb2, (N2,), minval=-lim2, maxval=lim2,
                            dtype=jnp.float32)
    a2 = jax.random.uniform(ka2, (R2, K2), minval=-lim2, maxval=lim2,
                            dtype=jnp.float32)
    bl2 = jax.random.uniform(kbl2, (N2, R2), minval=-0.1, maxval=0.1,
                             dtype=jnp.float32)

    out2 = jax.block_until_ready(linear_with_lora(x2, w2, b2, a2, bl2, alpha=alpha))
    ref2 = _reference(x2, w2, b2, a2, bl2, alpha)
    assert out2.shape == (M2, N2)
    assert jnp.allclose(out2, ref2, atol=1e-3, rtol=1e-3)

    print("KERNEL_OK")
</pallas_src>

<mosaic_0001>
module attributes {stable_mosaic.version = 11 : i64} {
  func.func @_linear_lora_kernel(%arg0: i32, %arg1: i32, %arg2: i32, %arg3: memref<8x128xf32, #tpu.memory_space<vmem>>, %arg4: memref<128x128xf32, #tpu.memory_space<vmem>>, %arg5: memref<1x128xf32, #tpu.memory_space<vmem>>, %arg6: memref<16x128xf32, #tpu.memory_space<vmem>>, %arg7: memref<128x16xf32, #tpu.memory_space<vmem>>, %arg8: memref<8x128xf32, #tpu.memory_space<vmem>>, %arg9: memref<8x128xf32, #tpu.memory_space<vmem>>, %arg10: memref<8x16xf32, #tpu.memory_space<vmem>>) attributes {dimension_semantics = [#tpu.dimension_semantics<parallel>, #tpu.dimension_semantics<parallel>, #tpu.dimension_semantics<arbitrary>], iteration_bounds = array<i64: 1, 1, 1>, scalar_prefetch = 0 : i64, scratch_operands = 2 : i64, tpu.core_type = #tpu.core_type<tc>, window_params = [{transform_indices = @transform_0, window_bounds = array<i64: 8, 128>}, {transform_indices = @transform_1, window_bounds = array<i64: 128, 128>}, {transform_indices = @transform_2, window_bounds = array<i64: 1, 128>}, {transform_indices = @transform_3, window_bounds = array<i64: 16, 128>}, {transform_indices = @transform_4, window_bounds = array<i64: 128, 16>}, {transform_indices = @transform_5, window_bounds = array<i64: 8, 128>}]} {
    %c0_i32 = arith.constant 0 : i32
    %0 = arith.cmpi eq, %arg2, %c0_i32 : i32
    %1 = arith.extui %0 : i1 to i32
    %c0_i32_0 = arith.constant 0 : i32
    %2 = arith.cmpi ne, %1, %c0_i32_0 : i32
    scf.if %2 {
      %cst_17 = arith.constant 0.000000e+00 : f32
      %17 = vector.broadcast %cst_17 : f32 to vector<8x128xf32>
      %c0_18 = arith.constant 0 : index
      %c0_19 = arith.constant 0 : index
      %18 = vector.load %arg9[%c0_18, %c0_19] : memref<8x128xf32, #tpu.memory_space<vmem>>, vector<8x128xf32>
      tpu.vector_store %arg9[%c0_18, %c0_19], %17 {strides = array<i32>} : memref<8x128xf32, #tpu.memory_space<vmem>>, vector<8x128xf32>,
      %cst_20 = arith.constant 0.000000e+00 : f32
      %19 = vector.broadcast %cst_20 : f32 to vector<8x16xf32>
      %c0_21 = arith.constant 0 : index
      %c0_22 = arith.constant 0 : index
      %20 = vector.load %arg10[%c0_21, %c0_22] : memref<8x16xf32, #tpu.memory_space<vmem>>, vector<8x16xf32>
      tpu.vector_store %arg10[%c0_21, %c0_22], %19 {strides = array<i32>} : memref<8x16xf32, #tpu.memory_space<vmem>>, vector<8x16xf32>,
    } else {
    }
    %c0 = arith.constant 0 : index
    %c0_1 = arith.constant 0 : index
    %3 = vector.load %arg3[%c0, %c0_1] : memref<8x128xf32, #tpu.memory_space<vmem>>, vector<8x128xf32>
    %c0_2 = arith.constant 0 : index
    %c0_3 = arith.constant 0 : index
    %4 = vector.load %arg4[%c0_2, %c0_3] : memref<128x128xf32, #tpu.memory_space<vmem>>, vector<128x128xf32>
    %c0_4 = arith.constant 0 : index
    %c0_5 = arith.constant 0 : index
    %5 = vector.load %arg6[%c0_4, %c0_5] : memref<16x128xf32, #tpu.memory_space<vmem>>, vector<16x128xf32>
    %c0_6 = arith.constant 0 : index
    %c0_7 = arith.constant 0 : index
    %6 = vector.load %arg9[%c0_6, %c0_7] : memref<8x128xf32, #tpu.memory_space<vmem>>, vector<8x128xf32>
    %cst = arith.constant dense<0.000000e+00> : vector<8x128xf32>
    %7 = tpu.matmul %3, %4, %cst {dimension_numbers = #tpu.dot_dimension_numbers<[1], [1], [0], [0], [0, 0, 1, 0], [], []>} : vector<8x128xf32>, vector<128x128xf32>, vector<8x128xf32> -> vector<8x128xf32>
    %8 = arith.addf %6, %7 : vector<8x128xf32>
    %c0_8 = arith.constant 0 : index
    %c0_9 = arith.constant 0 : index
    %9 = vector.load %arg9[%c0_8, %c0_9] : memref<8x128xf32, #tpu.memory_space<vmem>>, vector<8x128xf32>
    tpu.vector_store %arg9[%c0_8, %c0_9], %8 {strides = array<i32>} : memref<8x128xf32, #tpu.memory_space<vmem>>, vector<8x128xf32>,
    %c0_10 = arith.constant 0 : index
    %c0_11 = arith.constant 0 : index
    %10 = vector.load %arg10[%c0_10, %c0_11] : memref<8x16xf32, #tpu.memory_space<vmem>>, vector<8x16xf32>
    %cst_12 = arith.constant dense<0.000000e+00> : vector<8x16xf32>
    %11 = tpu.matmul %3, %5, %cst_12 {dimension_numbers = #tpu.dot_dimension_numbers<[1], [1], [0], [0], [0, 0, 1, 0], [], []>} : vector<8x128xf32>, vector<16x128xf32>, vector<8x16xf32> -> vector<8x16xf32>
    %12 = arith.addf %10, %11 : vector<8x16xf32>
    %c0_13 = arith.constant 0 : index
    %c0_14 = arith.constant 0 : index
    %13 = vector.load %arg10[%c0_13, %c0_14] : memref<8x16xf32, #tpu.memory_space<vmem>>, vector<8x16xf32>
    tpu.vector_store %arg10[%c0_13, %c0_14], %12 {strides = array<i32>} : memref<8x16xf32, #tpu.memory_space<vmem>>, vector<8x16xf32>,
    %c0_i32_15 = arith.constant 0 : i32
    %14 = arith.cmpi eq, %arg2, %c0_i32_15 : i32
    %15 = arith.extui %14 : i1 to i32
    %c0_i32_16 = arith.constant 0 : i32
    %16 = arith.cmpi ne, %15, %c0_i32_16 : i32
    scf.if %16 {
      %c0_17 = arith.constant 0 : index
      %c0_18 = arith.constant 0 : index
      %17 = vector.load %arg7[%c0_17, %c0_18] : memref<128x16xf32, #tpu.memory_space<vmem>>, vector<128x16xf32>
      %c0_19 = arith.constant 0 : index
      %c0_20 = arith.constant 0 : index
      %18 = vector.load %arg10[%c0_19, %c0_20] : memref<8x16xf32, #tpu.memory_space<vmem>>, vector<8x16xf32>
      %cst_21 = arith.constant dense<0.000000e+00> : vector<8x128xf32>
      %19 = tpu.matmul %18, %17, %cst_21 {dimension_numbers = #tpu.dot_dimension_numbers<[1], [1], [0], [0], [0, 0, 1, 0], [], []>} : vector<8x16xf32>, vector<128x16xf32>, vector<8x128xf32> -> vector<8x128xf32>
      %c0_22 = arith.constant 0 : index
      %c0_23 = arith.constant 0 : index
      %20 = vector.load %arg9[%c0_22, %c0_23] : memref<8x128xf32, #tpu.memory_space<vmem>>, vector<8x128xf32>
      %c0_24 = arith.constant 0 : index
      %c0_25 = arith.constant 0 : index
      %21 = vector.load %arg5[%c0_24, %c0_25] : memref<1x128xf32, #tpu.memory_space<vmem>>, vector<1x128xf32>
      %22 = vector.broadcast %21 : vector<1x128xf32> to vector<8x128xf32>
      %23 = arith.addf %20, %22 : vector<8x128xf32>
      %cst_26 = arith.constant 1.500000e+00 : f32
      %24 = vector.broadcast %cst_26 : f32 to vector<8x128xf32>
      %25 = arith.mulf %24, %19 : vector<8x128xf32>
      %26 = arith.addf %23, %25 : vector<8x128xf32>
      %c0_27 = arith.constant 0 : index
      %c0_28 = arith.constant 0 : index
      %27 = vector.load %arg8[%c0_27, %c0_28] : memref<8x128xf32, #tpu.memory_space<vmem>>, vector<8x128xf32>
      tpu.vector_store %arg8[%c0_27, %c0_28], %26 {strides = array<i32>} : memref<8x128xf32, #tpu.memory_space<vmem>>, vector<8x128xf32>,
    } else {
    }
    return
  }
  func.func @transform_0(%arg0: i32, %arg1: i32, %arg2: i32) -> (i32, i32) {
    %c0_i32 = arith.constant 0 : i32
    return %arg0, %arg2 : i32, i32
  }
  func.func @transform_1(%arg0: i32, %arg1: i32, %arg2: i32) -> (i32, i32) {
    %c0_i32 = arith.constant 0 : i32
    return %arg1, %arg2 : i32, i32
  }
  func.func @transform_2(%arg0: i32, %arg1: i32, %arg2: i32) -> (i32, i32) {
    %c0_i32 = arith.constant 0 : i32
    %c0_i32_0 = arith.constant 0 : i32
    return %c0_i32, %arg1 : i32, i32
  }
  func.func @transform_3(%arg0: i32, %arg1: i32, %arg2: i32) -> (i32, i32) {
    %c0_i32 = arith.constant 0 : i32
    %c0_i32_0 = arith.constant 0 : i32
    return %c0_i32, %arg2 : i32, i32
  }
  func.func @transform_4(%arg0: i32, %arg1: i32, %arg2: i32) -> (i32, i32) {
    %c0_i32 = arith.constant 0 : i32
    %c0_i32_0 = arith.constant 0 : i32
    return %arg1, %c0_i32 : i32, i32
  }
  func.func @transform_5(%arg0: i32, %arg1: i32, %arg2: i32) -> (i32, i32) {
    %c0_i32 = arith.constant 0 : i32
    return %arg0, %arg1 : i32, i32
  }
}

</mosaic_0001>

<llo_original>
// kernel: tpu_custom_call.1
$region0: #{tpu_custom_call.1}
  #allocation0 [shape = 'u32[]', space=smem, size = 0x4, offset = 0x4, fixed_abs, tag = 'smem constant byte address 0x4 - core index']
  #allocation1 [shape = 'u32[72,128]{1,0:T(1,128)}', space=vmem, size = 0x9000, scoped, tag = 'internal scratch']
  #allocation2 [shape = 'f32[8,128]{1,0:T(8,128)}', space=vmem, size = 0x1000, scoped, tag = 'scratch operand']
  #allocation3 [shape = 'f32[8,16]{1,0:T(8,128)}', space=vmem, size = 0x1000, scoped, tag = 'scratch operand']
  %s0 = inlined_call_operand.hbm [shape: f32[8,128], index: 0, kind: input, shape index: {}]
  %s1 = inlined_call_operand.vmem [shape: f32[128,128], index: 1, kind: input, shape index: {}]
  %s2 = inlined_call_operand.vmem [shape: f32[1,128], index: 2, kind: input, shape index: {}]
  %s3 = inlined_call_operand.vmem [shape: f32[16,128], index: 3, kind: input, shape index: {}]
  %s4 = inlined_call_operand.vmem [shape: f32[128,16], index: 4, kind: input, shape index: {}]
  %s5 = inlined_call_operand.hbm [shape: f32[8,128], index: 5, kind: output, shape index: {}]
  %s6 = sld [smem:[#allocation0]]
  $region42: #{tpu_custom_call.1} parent=0
    _
  %s8 = ssub.s32 1, %s6
  %s9 = scalar_select 0, %s8, %s6
  $region1: #{tpu_custom_call.1} parent=0
    #allocation4 [shape = 'u8[4096]{0}', space=vmem, size = 0x1000, scoped, tag = 'input window, operand 0, single buffered']
    #allocation5 [shape = 's32[1]{0}', space=sflag, size = 0x4, scoped, tag = 'scoped memory for tpu_custom_call.1']
    #allocation6 [shape = 's32[1]{0}', space=sflag, size = 0x4, scoped, tag = 'scoped memory for tpu_custom_call.1']
    #allocation7 [shape = 'u8[4096]{0}', space=vmem, size = 0x1000, scoped, tag = 'output window, operand 0, single buffered']
    %10 = vsyncpa [#allocation5], 0
    %11 = vsyncpa [#allocation6], 0
    // Predicated region
    $region2: #{tpu_custom_call.1} parent=1 // pred_check
      _
    $region3: #{tpu_custom_call.1} parent=1 // pred_check_branch
      %13 = sbr.rel (0) target = $region5
    $region4: #{tpu_custom_call.1} parent=1 // pred_region
      %15 = vsyncadd [#allocation5], 0
      %s17 = sshll.u32 %s0, 4
      %s18 = int_to_ptr.hbm [resolvable:$true] %s17
      %s19 = sshll.u32 [#allocation4], 4
      %s20 = int_to_ptr.vmem [resolvable:$true] %s19
      %22 = dma.hbm_to_vmem [thread:$0]  %s18, 128, %s20, [#allocation5]
    $region5: #{tpu_custom_call.1} parent=1 // pred_fallthru
      _
    // Predicated region
    $region6: #{tpu_custom_call.1} parent=1 // pred_check
      _
    $region7: #{tpu_custom_call.1} parent=1 // pred_check_branch
      %24 = sbr.rel (0) target = $region9
    $region8: #{tpu_custom_call.1} parent=1 // pred_region
      _
    $region9: #{tpu_custom_call.1} parent=1 // pred_fallthru
      _
    // Predicated region
    $region10: #{tpu_custom_call.1} parent=1 // pred_check
      _
    $region11: #{tpu_custom_call.1} parent=1 // pred_check_branch
      %26 = sbr.rel (0) target = $region13
    $region12: #{tpu_custom_call.1} parent=1 // pred_region
      _
    $region13: #{tpu_custom_call.1} parent=1 // pred_fallthru
      _
    // Predicated region
    $region14: #{tpu_custom_call.1} parent=1 // pred_check
      _
    $region15: #{tpu_custom_call.1} parent=1 // pred_check_branch
      %28 = sbr.rel (0) target = $region17
    $region16: #{tpu_custom_call.1} parent=1 // pred_region
      _
    $region17: #{tpu_custom_call.1} parent=1 // pred_fallthru
      _
    // Predicated region
    $region18: #{tpu_custom_call.1} parent=1 // pred_check
      _
    $region19: #{tpu_custom_call.1} parent=1 // pred_check_branch
      %30 = sbr.rel (0) target = $region21
    $region20: #{tpu_custom_call.1} parent=1 // pred_region
      _
    $region21: #{tpu_custom_call.1} parent=1 // pred_fallthru
      _
    // Predicated region
    $region22: #{tpu_custom_call.1} parent=1 // pred_check
      _
    $region23: #{tpu_custom_call.1} parent=1 // pred_check_branch
      %32 = sbr.rel (0) target = $region25
    $region24: #{tpu_custom_call.1} parent=1 // pred_region
      %34 = dma.done [#allocation5], 128
    $region25: #{tpu_custom_call.1} parent=1 // pred_fallthru
      _
    %p35 = scmp.eq.s32.totalorder 0, 0
    // Predicated region
    $region26: #{tpu_custom_call.1} parent=1 // pred_check
      %p36 = pneg %p35
    $region27: #{tpu_custom_call.1} parent=1 // pred_check_branch
      %38 = sbr.rel (%p36) target = $region29
    $region28: #{tpu_custom_call.1} parent=1 // pred_region
      %39 = vst [vmem:[#allocation2] sm:$0xff] 0.0
      %vm40 = vcmask 130048
      %41 = vst.msk [vmem:[#allocation3] sm:$0xff] %vm40, 0.0
    $region29: #{tpu_custom_call.1} parent=1 // pred_fallthru
      _
    %v42 = vld [vmem:[#allocation4] sm:$0xff]
    %v43 = vld [vmem:[%s1] sm:$0xff]
    %v44 = vld [vmem:[%s1 + $0x8] sm:$0xff]
    %v45 = vld [vmem:[%s1 + $0x10] sm:$0xff]
    %v46 = vld [vmem:[%s1 + $0x18] sm:$0xff]
    %v47 = vld [vmem:[%s1 + $0x20] sm:$0xff]
    %v48 = vld [vmem:[%s1 + $0x28] sm:$0xff]
    %v49 = vld [vmem:[%s1 + $0x30] sm:$0xff]
    %v50 = vld [vmem:[%s1 + $0x38] sm:$0xff]
    %v51 = vld [vmem:[%s1 + $0x40] sm:$0xff]
    %v52 = vld [vmem:[%s1 + $0x48] sm:$0xff]
    %v53 = vld [vmem:[%s1 + $0x50] sm:$0xff]
    %v54 = vld [vmem:[%s1 + $0x58] sm:$0xff]
    %v55 = vld [vmem:[%s1 + $0x60] sm:$0xff]
    %v56 = vld [vmem:[%s1 + $0x68] sm:$0xff]
    %v57 = vld [vmem:[%s1 + $0x70] sm:$0xff]
    %v58 = vld [vmem:[%s1 + $0x78] sm:$0xff]
    %v59 = vld [vmem:[%s3] sm:$0xff]
    %v60 = vld [vmem:[%s3 + $0x8] sm:$0xff]
    %v61 = vld [vmem:[#allocation2] sm:$0xff]
    %62 = vmatpush.xpose.msra.mxu0 %v58
    %63 = vmatpush.xpose.msra.mxu0 %v57
    %64 = vmatpush.xpose.msra.mxu0 %v56
    %65 = vmatpush.xpose.msra.mxu0 %v55
    %66 = vmatpush.xpose.msra.mxu0 %v54
    %67 = vmatpush.xpose.msra.mxu0 %v53
    %68 = vmatpush.xpose.msra.mxu0 %v52
    %69 = vmatpush.xpose.msra.mxu0 %v51
    %70 = vmatpush.xpose.msra.mxu0 %v50
    %71 = vmatpush.xpose.msra.mxu0 %v49
    %72 = vmatpush.xpose.msra.mxu0 %v48
    %73 = vmatpush.xpose.msra.mxu0 %v47
    %74 = vmatpush.xpose.msra.mxu0 %v46
    %75 = vmatpush.xpose.msra.mxu0 %v45
    %76 = vmatpush.xpose.msra.mxu0 %v44
    %77 = vmatpush.xpose.msra.mxu0 %v43
    %78 = vmatmul.f32.gmra.mxu0 %v42
    %v79 = vpop.f32.mrf.mxu0
    %v80 = vadd.f32 0.0, %v79
    %81 = vdwg.mxu0
    %v82 = vadd.f32 %v61, %v80
    %83 = vst [vmem:[#allocation2] sm:$0xff] %v82
    %v84 = vld [vmem:[#allocation3] sm:$0xff]
    %85 = vmatpush.xpose.msra.mxu0 0.0
    %86 = vmatpush.xpose.msra.mxu0 0.0
    %87 = vmatpush.xpose.msra.mxu0 0.0
    %88 = vmatpush.xpose.msra.mxu0 0.0
    %89 = vmatpush.xpose.msra.mxu0 0.0
    %90 = vmatpush.xpose.msra.mxu0 0.0
    %91 = vmatpush.xpose.msra.mxu0 0.0
    %92 = vmatpush.xpose.msra.mxu0 0.0
    %93 = vmatpush.xpose.msra.mxu0 0.0
    %94 = vmatpush.xpose.msra.mxu0 0.0
    %95 = vmatpush.xpose.msra.mxu0 0.0
    %96 = vmatpush.xpose.msra.mxu0 0.0
    %97 = vmatpush.xpose.msra.mxu0 0.0
    %98 = vmatpush.xpose.msra.mxu0 0.0
    %99 = vmatpush.xpose.msra.mxu0 %v60
    %100 = vmatpush.xpose.msra.mxu0 %v59
    %101 = vmatmul.f32.gmra.mxu0 %v42
    %v102 = vpop.f32.mrf.mxu0
    %v103 = vadd.f32 0.0, %v102
    %104 = vdwg.mxu0
    %v105 = vadd.f32 %v84, %v103
    %vm106 = vcmask 130048
    %107 = vst.msk [vmem:[#allocation3] sm:$0xff] %vm106, %v105
    // Predicated region
    $region30: #{tpu_custom_call.1} parent=1 // pred_check
      %p108 = pneg %p35
    $region31: #{tpu_custom_call.1} parent=1 // pred_check_branch
      %110 = sbr.rel (%p108) target = $region33
    $region32: #{tpu_custom_call.1} parent=1 // pred_region
      %v111 = vld [vmem:[%s4] sm:$0xff]
      %v112 = vld [vmem:[%s4 + $0x8] sm:$0xff]
      %v113 = vld [vmem:[%s4 + $0x10] sm:$0xff]
      %v114 = vld [vmem:[%s4 + $0x18] sm:$0xff]
      %v115 = vld [vmem:[%s4 + $0x20] sm:$0xff]
      %v116 = vld [vmem:[%s4 + $0x28] sm:$0xff]
      %v117 = vld [vmem:[%s4 + $0x30] sm:$0xff]
      %v118 = vld [vmem:[%s4 + $0x38] sm:$0xff]
      %v119 = vld [vmem:[%s4 + $0x40] sm:$0xff]
      %v120 = vld [vmem:[%s4 + $0x48] sm:$0xff]
      %v121 = vld [vmem:[%s4 + $0x50] sm:$0xff]
      %v122 = vld [vmem:[%s4 + $0x58] sm:$0xff]
      %v123 = vld [vmem:[%s4 + $0x60] sm:$0xff]
      %v124 = vld [vmem:[%s4 + $0x68] sm:$0xff]
      %v125 = vld [vmem:[%s4 + $0x70] sm:$0xff]
      %v126 = vld [vmem:[%s4 + $0x78] sm:$0xff]
      %v127 = vld [vmem:[#allocation3] sm:$0xff]
      %v129 = vsel %vm106, %v127, 0
      %v132 = vsel %vm106, %v111, 0
      %v135 = vsel %vm106, %v112, 0
      %v138 = vsel %vm106, %v113, 0
      %v141 = vsel %vm106, %v114, 0
      %v144 = vsel %vm106, %v115, 0
      %v147 = vsel %vm106, %v116, 0
      %v150 = vsel %vm106, %v117, 0
      %v153 = vsel %vm106, %v118, 0
      %v156 = vsel %vm106, %v119, 0
      %v159 = vsel %vm106, %v120, 0
      %v162 = vsel %vm106, %v121, 0
      %v165 = vsel %vm106, %v122, 0
      %v168 = vsel %vm106, %v123, 0
      %v171 = vsel %vm106, %v124, 0
      %v174 = vsel %vm106, %v125, 0
      %v177 = vsel %vm106, %v126, 0
      %179 = vmatpush.xpose.msra.mxu0 %v177
      %180 = vmatpush.xpose.msra.mxu0 %v174
      %181 = vmatpush.xpose.msra.mxu0 %v171
      %182 = vmatpush.xpose.msra.mxu0 %v168
      %183 = vmatpush.xpose.msra.mxu0 %v165
      %184 = vmatpush.xpose.msra.mxu0 %v162
      %185 = vmatpush.xpose.msra.mxu0 %v159
      %186 = vmatpush.xpose.msra.mxu0 %v156
      %187 = vmatpush.xpose.msra.mxu0 %v153
      %188 = vmatpush.xpose.msra.mxu0 %v150
      %189 = vmatpush.xpose.msra.mxu0 %v147
      %190 = vmatpush.xpose.msra.mxu0 %v144
      %191 = vmatpush.xpose.msra.mxu0 %v141
      %192 = vmatpush.xpose.msra.mxu0 %v138
      %193 = vmatpush.xpose.msra.mxu0 %v135
      %194 = vmatpush.xpose.msra.mxu0 %v132
      %195 = vmatmul.f32.gmra.mxu0 %v129
      %v196 = vpop.f32.mrf.mxu0
      %v197 = vadd.f32 0.0, %v196
      %198 = vdwg.mxu0
      %v199 = vld [vmem:[#allocation2] sm:$0xff]
      %v200 = vld [vmem:[%s2] sm:$0x1]
      %v202 = vperm.slane %v200, 0
      %v204 = vadd.f32 %v199, %v202
      %v205 = vmul.f32 %v197, 1.5
      %v206 = vadd.f32 %v204, %v205
      %207 = vst [vmem:[#allocation7] sm:$0xff] %v206
    $region33: #{tpu_custom_call.1} parent=1 // pred_fallthru
      _
    // Predicated region
    $region34: #{tpu_custom_call.1} parent=1 // pred_check
      _
    $region35: #{tpu_custom_call.1} parent=1 // pred_check_branch
      %209 = sbr.rel (0) target = $region37
    $region36: #{tpu_custom_call.1} parent=1 // pred_region
      %211 = vsyncadd [#allocation6], 0
      %s213 = sshll.u32 [#allocation7], 4
      %s214 = int_to_ptr.vmem [resolvable:$true] %s213
      %s215 = sshll.u32 %s5, 4
      %s216 = int_to_ptr.hbm [resolvable:$true] %s215
      %218 = dma.vmem_to_hbm [thread:$0]  %s214, 128, %s216, [#allocation6]
    $region37: #{tpu_custom_call.1} parent=1 // pred_fallthru
      _
    // Predicated region
    $region38: #{tpu_custom_call.1} parent=1 // pred_check
      _
    $region39: #{tpu_custom_call.1} parent=1 // pred_check_branch
      %220 = sbr.rel (0) target = $region41
    $region40: #{tpu_custom_call.1} parent=1 // pred_region
      %222 = dma.done [#allocation6], 128
    $region41: #{tpu_custom_call.1} parent=1 // pred_fallthru
      _
    %223 = vsyncpa [#allocation5], 1
    %224 = vsyncpa [#allocation6], 1

</llo_original>
